<compile_context>
chip_gen: v5e
topology: v5e:2x2
jax: 0.10.0
libtpu: 0.0.40
codegen_flags: <defaults>
</compile_context>

<pallas_src>
import jax
import jax.numpy as jnp
from jax.experimental import pallas as pl
from jax.experimental.pallas import tpu as pltpu

IN_FEATURES = 16
OUT_FEATURES = 7
PACK = 8                          # logical rows packed per vreg row
PACK_IN = PACK * IN_FEATURES      # 128 lanes  (one full vreg row of input)
PACK_OUT = PACK * OUT_FEATURES    # 56 lanes


def linear_kernel(x_ref, w_ref, b_ref, o_ref):
    # x_ref: (rows, K), w_ref: (K, N) [pre-transposed / block-diagonal],
    # b_ref: (1, N), o_ref: (rows, N)
    y = jnp.dot(x_ref[...], w_ref[...], preferred_element_type=jnp.float32)
    o_ref[...] = (y + b_ref[...]).astype(o_ref.dtype)


def _cost_estimate(rows, k, n):
    return pl.CostEstimate(
        flops=2 * rows * k * n,
        transcendentals=0,
        bytes_accessed=4 * (rows * k + rows * n + k * n + n),
    )


def softmax_classifier_forward(x, weight, bias, *, tb=32768):
    """x: (B, 16) f32, weight: (7, 16) f32, bias: (7,) f32 -> (B, 7) f32."""
    B = x.shape[0]
    weight = jnp.asarray(weight)
    bias = jnp.asarray(bias)

    if B < 64:
        # Tiny batch: single grid step, unpacked.  Wall-clock is launch
        # overhead; packing/tiling would only add wrapper ops.
        w_t = weight.T
        bias2d = bias.reshape(1, OUT_FEATURES)
        return pl.pallas_call(
            linear_kernel,
            out_shape=jax.ShapeDtypeStruct((B, OUT_FEATURES), x.dtype),
            grid_spec=pltpu.PrefetchScalarGridSpec(
                num_scalar_prefetch=0,
                grid=(1,),
                in_specs=[
                    pl.BlockSpec((B, IN_FEATURES), lambda i: (0, 0)),
                    pl.BlockSpec((IN_FEATURES, OUT_FEATURES), lambda i: (0, 0)),
                    pl.BlockSpec((1, OUT_FEATURES), lambda i: (0, 0)),
                ],
                out_specs=pl.BlockSpec((B, OUT_FEATURES), lambda i: (0, 0)),
            ),
            compiler_params=pltpu.CompilerParams(
                dimension_semantics=("arbitrary",)),
            cost_estimate=_cost_estimate(B, IN_FEATURES, OUT_FEATURES),
        )(x, w_t, bias2d)

    # ---- large batch: 8-row packing + batch tiling ----
    # Pad only to the next multiple of 8 (needed for the packed view);
    # padded rows produce `bias` logits and are sliced off at the end.
    b_pad = ((B + PACK - 1) // PACK) * PACK
    if b_pad != B:
        x = jnp.pad(x, ((0, b_pad - B), (0, 0)))
    b8 = b_pad // PACK
    x_packed = x.reshape(b8, PACK_IN)          # free row-major view

    # Block-diagonal weight (128, 56) and tiled bias (1, 56), built once.
    w_blk = jnp.kron(jnp.eye(PACK, dtype=weight.dtype), weight.T)
    b_blk = jnp.tile(bias, PACK).reshape(1, PACK_OUT)

    # Packed-row tile: multiple of 8 sublanes; clamp so the grid has >= 2
    # steps for moderate B (megacore on v7x) and VMEM stays small.
    tbp = max(8, (tb // PACK) // 8 * 8)
    half_up = ((((b8 + 1) // 2) + 7) // 8) * 8
    tbp = min(tbp, max(8, half_up))
    n_tiles = pl.cdiv(b8, tbp)                 # partial last block is masked

    out_packed = pl.pallas_call(
        linear_kernel,
        out_shape=jax.ShapeDtypeStruct((b8, PACK_OUT), x.dtype),
        grid_spec=pltpu.PrefetchScalarGridSpec(
            num_scalar_prefetch=0,
            grid=(n_tiles,),
            in_specs=[
                pl.BlockSpec((tbp, PACK_IN), lambda i: (i, 0)),
                # weight/bias: constant index_map -> stay resident in VMEM
                pl.BlockSpec((PACK_IN, PACK_OUT), lambda i: (0, 0)),
                pl.BlockSpec((1, PACK_OUT), lambda i: (0, 0)),
            ],
            out_specs=pl.BlockSpec((tbp, PACK_OUT), lambda i: (i, 0)),
        ),
        compiler_params=pltpu.CompilerParams(
            dimension_semantics=("parallel",)),
        cost_estimate=_cost_estimate(b8, PACK_IN, PACK_OUT),
    )(x_packed, w_blk, b_blk)

    out = out_packed.reshape(b_pad, OUT_FEATURES)   # free view back to (B,7)
    return out[:B] if b_pad != B else out


if __name__ == "__main__":
    key = jax.random.PRNGKey(0)
    kx, kw, kb, kx2 = jax.random.split(key, 4)

    # Deterministic parameter init mimicking nn.Linear default
    # (uniform in [-1/sqrt(fan_in), 1/sqrt(fan_in)]).
    bound = 1.0 / jnp.sqrt(jnp.float32(IN_FEATURES))
    weight = jax.random.uniform(
        kw, (OUT_FEATURES, IN_FEATURES), dtype=jnp.float32,
        minval=-bound, maxval=bound)
    bias = jax.random.uniform(
        kb, (OUT_FEATURES,), dtype=jnp.float32, minval=-bound, maxval=bound)

    # --- tiny-batch path (single unpacked grid step) ---
    batch = 8
    x = jax.random.normal(kx, (batch, IN_FEATURES), dtype=jnp.float32)
    out = softmax_classifier_forward(x, weight, bias)
    jax.block_until_ready(out)
    ref = x @ weight.T + bias
    assert out.shape == (batch, OUT_FEATURES)
    assert jnp.allclose(out, ref, atol=1e-5, rtol=1e-5)

    # --- packed tiled path: ragged B (not a multiple of 8 nor of the tile),
    #     small tb so the test exercises >=2 grid steps + masked tail ---
    batch2 = 1001
    x2 = jax.random.normal(kx2, (batch2, IN_FEATURES), dtype=jnp.float32)
    out2 = softmax_classifier_forward(x2, weight, bias, tb=512)
    jax.block_until_ready(out2)
    ref2 = x2 @ weight.T + bias
    assert out2.shape == (batch2, OUT_FEATURES)
    assert jnp.allclose(out2, ref2, atol=1e-5, rtol=1e-5)

    print("KERNEL_OK")
</pallas_src>

<mosaic_0001>
module attributes {stable_mosaic.version = 11 : i64} {
  func.func @linear_kernel(%arg0: i32, %arg1: memref<8x16xf32, #tpu.memory_space<vmem>>, %arg2: memref<16x7xf32, #tpu.memory_space<vmem>>, %arg3: memref<1x7xf32, #tpu.memory_space<vmem>>, %arg4: memref<8x7xf32, #tpu.memory_space<vmem>>) attributes {dimension_semantics = [#tpu.dimension_semantics<arbitrary>], iteration_bounds = array<i64: 1>, scalar_prefetch = 0 : i64, scratch_operands = 0 : i64, tpu.core_type = #tpu.core_type<tc>, window_params = [{pipeline_mode = #tpu.pipeline_mode<synchronous>, transform_indices = @transform_0, window_bounds = array<i64: 8, 16>}, {pipeline_mode = #tpu.pipeline_mode<synchronous>, transform_indices = @transform_1, window_bounds = array<i64: 16, 7>}, {pipeline_mode = #tpu.pipeline_mode<synchronous>, transform_indices = @transform_2, window_bounds = array<i64: 1, 7>}, {pipeline_mode = #tpu.pipeline_mode<synchronous>, transform_indices = @transform_3, window_bounds = array<i64: 8, 7>}]} {
    %c0 = arith.constant 0 : index
    %c0_0 = arith.constant 0 : index
    %0 = vector.load %arg1[%c0, %c0_0] : memref<8x16xf32, #tpu.memory_space<vmem>>, vector<8x16xf32>
    %c0_1 = arith.constant 0 : index
    %c0_2 = arith.constant 0 : index
    %1 = vector.load %arg2[%c0_1, %c0_2] : memref<16x7xf32, #tpu.memory_space<vmem>>, vector<16x7xf32>
    %cst = arith.constant dense<0.000000e+00> : vector<8x7xf32>
    %2 = tpu.matmul %0, %1, %cst {dimension_numbers = #tpu.dot_dimension_numbers<[1], [0], [0], [1], [0, 0, 1, 1], [], []>} : vector<8x16xf32>, vector<16x7xf32>, vector<8x7xf32> -> vector<8x7xf32>
    %c0_3 = arith.constant 0 : index
    %c0_4 = arith.constant 0 : index
    %3 = vector.load %arg3[%c0_3, %c0_4] : memref<1x7xf32, #tpu.memory_space<vmem>>, vector<1x7xf32>
    %4 = vector.broadcast %3 : vector<1x7xf32> to vector<8x7xf32>
    %5 = arith.addf %2, %4 : vector<8x7xf32>
    %c0_5 = arith.constant 0 : index
    %c0_6 = arith.constant 0 : index
    %6 = vector.load %arg4[%c0_5, %c0_6] : memref<8x7xf32, #tpu.memory_space<vmem>>, vector<8x7xf32>
    tpu.vector_store %arg4[%c0_5, %c0_6], %5 {strides = array<i32>} : memref<8x7xf32, #tpu.memory_space<vmem>>, vector<8x7xf32>,
    return
  }
  func.func @transform_0(%arg0: i32) -> (i32, i32) {
    %c0_i32 = arith.constant 0 : i32
    %c0_i32_0 = arith.constant 0 : i32
    %c0_i32_1 = arith.constant 0 : i32
    return %c0_i32, %c0_i32_0 : i32, i32
  }
  func.func @transform_1(%arg0: i32) -> (i32, i32) {
    %c0_i32 = arith.constant 0 : i32
    %c0_i32_0 = arith.constant 0 : i32
    %c0_i32_1 = arith.constant 0 : i32
    return %c0_i32, %c0_i32_0 : i32, i32
  }
  func.func @transform_2(%arg0: i32) -> (i32, i32) {
    %c0_i32 = arith.constant 0 : i32
    %c0_i32_0 = arith.constant 0 : i32
    %c0_i32_1 = arith.constant 0 : i32
    return %c0_i32, %c0_i32_0 : i32, i32
  }
  func.func @transform_3(%arg0: i32) -> (i32, i32) {
    %c0_i32 = arith.constant 0 : i32
    %c0_i32_0 = arith.constant 0 : i32
    %c0_i32_1 = arith.constant 0 : i32
    return %c0_i32, %c0_i32_0 : i32, i32
  }
}

</mosaic_0001>

<llo_original>
// kernel: tpu_custom_call.1
$region0: #{tpu_custom_call.1}
  #allocation0 [shape = 'u32[]', space=smem, size = 0x4, offset = 0x4, fixed_abs, tag = 'smem constant byte address 0x4 - core index']
  #allocation1 [shape = 'u32[72,128]{1,0:T(1,128)}', space=vmem, size = 0x9000, scoped, tag = 'internal scratch']
  %s0 = inlined_call_operand.vmem [shape: f32[8,16], index: 0, kind: input, shape index: {}]
  %s1 = inlined_call_operand.vmem [shape: f32[16,7], index: 1, kind: input, shape index: {}]
  %s2 = inlined_call_operand.vmem [shape: f32[1,7], index: 2, kind: input, shape index: {}]
  %s3 = inlined_call_operand.hbm [shape: f32[8,7], index: 3, kind: output, shape index: {}]
  %s4 = sld [smem:[#allocation0]]
  $region22: #{tpu_custom_call.1} parent=0
    _
  %s6 = ssub.s32 1, %s4
  %s7 = scalar_select 0, %s6, %s4
  $region1: #{tpu_custom_call.1} parent=0
    #allocation2 [shape = 'u8[4096]{0}', space=vmem, size = 0x1000, scoped, tag = 'output window, operand 0, single buffered']
    #allocation3 [shape = 's32[1]{0}', space=sflag, size = 0x4, scoped, tag = 'scoped memory for tpu_custom_call.1']
    %8 = vsyncpa [#allocation3], 0
    // Predicated region
    $region2: #{tpu_custom_call.1} parent=1 // pred_check
      _
    $region3: #{tpu_custom_call.1} parent=1 // pred_check_branch
      %10 = sbr.rel (0) target = $region5
    $region4: #{tpu_custom_call.1} parent=1 // pred_region
      _
    $region5: #{tpu_custom_call.1} parent=1 // pred_fallthru
      _
    // Predicated region
    $region6: #{tpu_custom_call.1} parent=1 // pred_check
      _
    $region7: #{tpu_custom_call.1} parent=1 // pred_check_branch
      %12 = sbr.rel (0) target = $region9
    $region8: #{tpu_custom_call.1} parent=1 // pred_region
      _
    $region9: #{tpu_custom_call.1} parent=1 // pred_fallthru
      _
    // Predicated region
    $region10: #{tpu_custom_call.1} parent=1 // pred_check
      _
    $region11: #{tpu_custom_call.1} parent=1 // pred_check_branch
      %14 = sbr.rel (0) target = $region13
    $region12: #{tpu_custom_call.1} parent=1 // pred_region
      _
    $region13: #{tpu_custom_call.1} parent=1 // pred_fallthru
      _
    %v15 = vld [vmem:[%s0] sm:$0xff]
    %v16 = vld [vmem:[%s1] sm:$0xff]
    %v17 = vld [vmem:[%s1 + $0x8] sm:$0xff]
    %v18 = vld [vmem:[%s2] sm:$0x1]
    %v20 = vperm.slane %v18, 0
    %vm22 = vcmask 130048
    %v24 = vsel %vm22, %v15, 0
    %26 = vmatpush.msra.mxu0 0.0
    %27 = vmatpush.msra.mxu0 0.0
    %28 = vmatpush.msra.mxu0 0.0
    %29 = vmatpush.msra.mxu0 0.0
    %30 = vmatpush.msra.mxu0 0.0
    %31 = vmatpush.msra.mxu0 0.0
    %32 = vmatpush.msra.mxu0 0.0
    %33 = vmatpush.msra.mxu0 0.0
    %34 = vmatpush.msra.mxu0 0.0
    %35 = vmatpush.msra.mxu0 0.0
    %36 = vmatpush.msra.mxu0 0.0
    %37 = vmatpush.msra.mxu0 0.0
    %38 = vmatpush.msra.mxu0 0.0
    %39 = vmatpush.msra.mxu0 0.0
    %40 = vmatpush.msra.mxu0 %v17
    %41 = vmatpush.msra.mxu0 %v16
    %42 = vmatmul.f32.gmra.mxu0 %v24
    %v43 = vpop.f32.mrf.mxu0
    %v44 = vadd.f32 %v20, %v43
    %45 = vdwg.mxu0
    %vm46 = vcmask 56320
    %47 = vst.msk [vmem:[#allocation2] sm:$0xff] %vm46, %v44
    // Predicated region
    $region14: #{tpu_custom_call.1} parent=1 // pred_check
      _
    $region15: #{tpu_custom_call.1} parent=1 // pred_check_branch
      %49 = sbr.rel (0) target = $region17
    $region16: #{tpu_custom_call.1} parent=1 // pred_region
      %51 = vsyncadd [#allocation3], 0
      %s53 = sshll.u32 [#allocation2], 4
      %s54 = int_to_ptr.vmem [resolvable:$true] %s53
      %s55 = sshll.u32 %s3, 4
      %s56 = int_to_ptr.hbm [resolvable:$true] %s55
      %58 = dma.vmem_to_hbm [thread:$0]  %s54, 128, %s56, [#allocation3]
    $region17: #{tpu_custom_call.1} parent=1 // pred_fallthru
      _
    // Predicated region
    $region18: #{tpu_custom_call.1} parent=1 // pred_check
      _
    $region19: #{tpu_custom_call.1} parent=1 // pred_check_branch
      %60 = sbr.rel (0) target = $region21
    $region20: #{tpu_custom_call.1} parent=1 // pred_region
      %62 = dma.done [#allocation3], 128
    $region21: #{tpu_custom_call.1} parent=1 // pred_fallthru
      _
    %63 = vsyncpa [#allocation3], 1

</llo_original>
